<compile_context>
chip_gen: v7x
topology: tpu7x:2x2x1
jax: 0.10.0
libtpu: 0.0.40
codegen_flags: <defaults>
</compile_context>

<pallas_src>
import jax
import jax.numpy as jnp
from jax import lax
from jax.experimental import pallas as pl
from jax.experimental.pallas import tpu as pltpu


def _gated_fusion_kernel(t_ref, s_ref, wt_ref, ws_ref, b_ref, o_ref):
    # t_ref: (1, M, N)   s_ref: (1, N, M)   wt/ws: (N, N)   b: (1, N)
    t = t_ref[0]                                   # (M, N)
    s = s_ref[0]                                   # (N, M)

    # in_t @ w_t
    t_proj = jnp.dot(t, wt_ref[...], preferred_element_type=jnp.float32)

    # in_s.transpose(-1, -2) @ w_s  ==  contraction over s's leading axis,
    # so no explicit activation transpose is materialized in VMEM.
    s_proj = lax.dot_general(
        s, ws_ref[...],
        dimension_numbers=(((0,), (0,)), ((), ())),
        preferred_element_type=jnp.float32)        # (M, N)

    z = t_proj + s_proj + b_ref[...]               # bias (1, N) broadcasts
    gate = jax.nn.sigmoid(z)                       # EUP exp + VPU
    out = t_proj * gate + s_proj * (1.0 - gate)

    o_ref[0] = out.astype(o_ref.dtype)


def gated_fusion_forward(in_t, in_s, params):
    """in_t: (B, M, N) float32, in_s: (B, N, M) float32."""
    w_t, w_s, bias = params
    B, M, N = in_t.shape
    assert in_s.shape == (B, N, M)
    assert w_t.shape == (N, N) and w_s.shape == (N, N) and bias.shape == (1, N)

    flops = 2 * B * (2 * M * N * N) + 8 * B * M * N          # matmuls + gate math
    bytes_accessed = 4 * (in_t.size + in_s.size + w_t.size +
                          w_s.size + bias.size + B * M * N)

    return pl.pallas_call(
        _gated_fusion_kernel,
        out_shape=jax.ShapeDtypeStruct((B, M, N), jnp.float32),
        grid=(B,),
        in_specs=[
            pl.BlockSpec((1, M, N), lambda b: (b, 0, 0)),     # in_t tile per batch
            pl.BlockSpec((1, N, M), lambda b: (b, 0, 0)),     # in_s tile per batch
            pl.BlockSpec((N, N),    lambda b: (0, 0)),        # w_t resident in VMEM
            pl.BlockSpec((N, N),    lambda b: (0, 0)),        # w_s resident in VMEM
            pl.BlockSpec((1, N),    lambda b: (0, 0)),        # bias resident in VMEM
        ],
        out_specs=pl.BlockSpec((1, M, N), lambda b: (b, 0, 0)),
        compiler_params=pltpu.CompilerParams(
            dimension_semantics=("parallel",)),               # megacore on v7x
        cost_estimate=pl.CostEstimate(
            flops=flops, transcendentals=B * M * N,
            bytes_accessed=bytes_accessed),
    )(in_t, in_s, w_t, w_s, bias)


def init_params(key, num_nodes):
    # Matches GatedFusion.reset_parameters: uniform(0, 1) for w_t, w_s, bias.
    k_wt, k_ws, k_b = jax.random.split(key, 3)
    w_t = jax.random.uniform(k_wt, (num_nodes, num_nodes), jnp.float32, 0.0, 1.0)
    w_s = jax.random.uniform(k_ws, (num_nodes, num_nodes), jnp.float32, 0.0, 1.0)
    bias = jax.random.uniform(k_b, (1, num_nodes), jnp.float32, 0.0, 1.0)
    return (w_t, w_s, bias)


if __name__ == "__main__":
    # Small, module-consistent shapes: in_t (B, seq, num_nodes), in_s (B, num_nodes, seq).
    batch, seq, num_nodes = 2, 8, 32

    key = jax.random.PRNGKey(0)
    k_t, k_s, k_p = jax.random.split(key, 3)
    in_t = jax.random.normal(k_t, (batch, seq, num_nodes), dtype=jnp.float32)
    in_s = jax.random.normal(k_s, (batch, num_nodes, seq), dtype=jnp.float32)
    params = init_params(k_p, num_nodes)

    out = gated_fusion_forward(in_t, in_s, params)
    jax.block_until_ready(out)

    # Pure-JAX reference of the same math.
    w_t, w_s, bias = params
    t_ref = in_t @ w_t
    s_ref = jnp.swapaxes(in_s, -1, -2) @ w_s
    gate = jax.nn.sigmoid(t_ref + s_ref + bias)
    ref = t_ref * gate + s_ref * (1.0 - gate)

    assert out.shape == (batch, seq, num_nodes)
    assert jnp.allclose(out, ref, atol=1e-5, rtol=1e-5)

    print("KERNEL_OK")
</pallas_src>

<mosaic_0001>
module attributes {stable_mosaic.version = 11 : i64} {
  func.func @_gated_fusion_kernel(%arg0: i32, %arg1: memref<1x8x32xf32, #tpu.memory_space<vmem>>, %arg2: memref<1x32x8xf32, #tpu.memory_space<vmem>>, %arg3: memref<32x32xf32, #tpu.memory_space<vmem>>, %arg4: memref<32x32xf32, #tpu.memory_space<vmem>>, %arg5: memref<1x32xf32, #tpu.memory_space<vmem>>, %arg6: memref<1x8x32xf32, #tpu.memory_space<vmem>>) attributes {dimension_semantics = [#tpu.dimension_semantics<parallel>], iteration_bounds = array<i64: 2>, scalar_prefetch = 0 : i64, scratch_operands = 0 : i64, tpu.core_type = #tpu.core_type<tc>, window_params = [{transform_indices = @transform_0, window_bounds = array<i64: 1, 8, 32>}, {transform_indices = @transform_1, window_bounds = array<i64: 1, 32, 8>}, {pipeline_mode = #tpu.pipeline_mode<synchronous>, transform_indices = @transform_2, window_bounds = array<i64: 32, 32>}, {pipeline_mode = #tpu.pipeline_mode<synchronous>, transform_indices = @transform_3, window_bounds = array<i64: 32, 32>}, {pipeline_mode = #tpu.pipeline_mode<synchronous>, transform_indices = @transform_4, window_bounds = array<i64: 1, 32>}, {transform_indices = @transform_5, window_bounds = array<i64: 1, 8, 32>}]} {
    %c0 = arith.constant 0 : index
    %c0_0 = arith.constant 0 : index
    %c0_1 = arith.constant 0 : index
    %0 = vector.load %arg1[%c0, %c0_0, %c0_1] : memref<1x8x32xf32, #tpu.memory_space<vmem>>, vector<1x8x32xf32>
    %1 = vector.shape_cast %0 : vector<1x8x32xf32> to vector<8x32xf32>
    %c0_2 = arith.constant 0 : index
    %c0_3 = arith.constant 0 : index
    %c0_4 = arith.constant 0 : index
    %2 = vector.load %arg2[%c0_2, %c0_3, %c0_4] : memref<1x32x8xf32, #tpu.memory_space<vmem>>, vector<1x32x8xf32>
    %3 = vector.shape_cast %2 : vector<1x32x8xf32> to vector<32x8xf32>
    %c0_5 = arith.constant 0 : index
    %c0_6 = arith.constant 0 : index
    %4 = vector.load %arg3[%c0_5, %c0_6] : memref<32x32xf32, #tpu.memory_space<vmem>>, vector<32x32xf32>
    %cst = arith.constant dense<0.000000e+00> : vector<8x32xf32>
    %5 = tpu.matmul %1, %4, %cst {dimension_numbers = #tpu.dot_dimension_numbers<[1], [0], [0], [1], [0, 0, 1, 1], [], []>} : vector<8x32xf32>, vector<32x32xf32>, vector<8x32xf32> -> vector<8x32xf32>
    %c0_7 = arith.constant 0 : index
    %c0_8 = arith.constant 0 : index
    %6 = vector.load %arg4[%c0_7, %c0_8] : memref<32x32xf32, #tpu.memory_space<vmem>>, vector<32x32xf32>
    %cst_9 = arith.constant dense<0.000000e+00> : vector<8x32xf32>
    %7 = tpu.matmul %3, %6, %cst_9 {dimension_numbers = #tpu.dot_dimension_numbers<[0], [0], [1], [1], [0, 1, 1, 1], [], []>} : vector<32x8xf32>, vector<32x32xf32>, vector<8x32xf32> -> vector<8x32xf32>
    %8 = arith.addf %5, %7 : vector<8x32xf32>
    %c0_10 = arith.constant 0 : index
    %c0_11 = arith.constant 0 : index
    %9 = vector.load %arg5[%c0_10, %c0_11] : memref<1x32xf32, #tpu.memory_space<vmem>>, vector<1x32xf32>
    %10 = vector.broadcast %9 : vector<1x32xf32> to vector<8x32xf32>
    %11 = arith.addf %8, %10 : vector<8x32xf32>
    %12 = arith.negf %11 : vector<8x32xf32>
    %13 = math.exp %12 : vector<8x32xf32>
    %cst_12 = arith.constant 1.000000e+00 : f32
    %14 = vector.broadcast %cst_12 : f32 to vector<8x32xf32>
    %15 = arith.addf %14, %13 : vector<8x32xf32>
    %16 = arith.divf %14, %15 : vector<8x32xf32>
    %17 = arith.mulf %5, %16 : vector<8x32xf32>
    %cst_13 = arith.constant 1.000000e+00 : f32
    %18 = vector.broadcast %cst_13 : f32 to vector<8x32xf32>
    %19 = arith.subf %18, %16 : vector<8x32xf32>
    %20 = arith.mulf %7, %19 : vector<8x32xf32>
    %21 = arith.addf %17, %20 : vector<8x32xf32>
    %c0_14 = arith.constant 0 : index
    %c0_15 = arith.constant 0 : index
    %c0_16 = arith.constant 0 : index
    %22 = vector.load %arg6[%c0_14, %c0_15, %c0_16] : memref<1x8x32xf32, #tpu.memory_space<vmem>>, vector<1x8x32xf32>
    %23 = vector.shape_cast %22 : vector<1x8x32xf32> to vector<8x32xf32>
    %24 = vector.shape_cast %21 : vector<8x32xf32> to vector<1x8x32xf32>
    tpu.vector_store %arg6[%c0_14, %c0_15, %c0_16], %24 {strides = array<i32>} : memref<1x8x32xf32, #tpu.memory_space<vmem>>, vector<1x8x32xf32>,
    return
  }
  func.func @transform_0(%arg0: i32) -> (i32, i32, i32) {
    %c0_i32 = arith.constant 0 : i32
    %c0_i32_0 = arith.constant 0 : i32
    %c0_i32_1 = arith.constant 0 : i32
    return %arg0, %c0_i32, %c0_i32_0 : i32, i32, i32
  }
  func.func @transform_1(%arg0: i32) -> (i32, i32, i32) {
    %c0_i32 = arith.constant 0 : i32
    %c0_i32_0 = arith.constant 0 : i32
    %c0_i32_1 = arith.constant 0 : i32
    return %arg0, %c0_i32, %c0_i32_0 : i32, i32, i32
  }
  func.func @transform_2(%arg0: i32) -> (i32, i32) {
    %c0_i32 = arith.constant 0 : i32
    %c0_i32_0 = arith.constant 0 : i32
    %c0_i32_1 = arith.constant 0 : i32
    return %c0_i32, %c0_i32_0 : i32, i32
  }
  func.func @transform_3(%arg0: i32) -> (i32, i32) {
    %c0_i32 = arith.constant 0 : i32
    %c0_i32_0 = arith.constant 0 : i32
    %c0_i32_1 = arith.constant 0 : i32
    return %c0_i32, %c0_i32_0 : i32, i32
  }
  func.func @transform_4(%arg0: i32) -> (i32, i32) {
    %c0_i32 = arith.constant 0 : i32
    %c0_i32_0 = arith.constant 0 : i32
    %c0_i32_1 = arith.constant 0 : i32
    return %c0_i32, %c0_i32_0 : i32, i32
  }
  func.func @transform_5(%arg0: i32) -> (i32, i32, i32) {
    %c0_i32 = arith.constant 0 : i32
    %c0_i32_0 = arith.constant 0 : i32
    %c0_i32_1 = arith.constant 0 : i32
    return %arg0, %c0_i32, %c0_i32_0 : i32, i32, i32
  }
}

</mosaic_0001>

<llo_original>
// kernel: tpu_custom_call.1
$region0: #{tpu_custom_call.1}
  #allocation0 [shape = 'u32[]', space=smem, size = 0x4, offset = 0x4, fixed_abs, tag = 'smem constant byte address 0x4 - core index']
  #allocation1 [shape = 'u32[144,128]{1,0:T(1,128)}', space=vmem, size = 0x12000, scoped, tag = 'internal scratch']
  %s0 = inlined_call_operand.vmem [shape: f32[2,8,32], index: 0, kind: input, shape index: {}]
  %s1 = inlined_call_operand.vmem [shape: f32[2,32,8], index: 1, kind: input, shape index: {}]
  %s2 = inlined_call_operand.vmem [shape: f32[32,32], index: 2, kind: input, shape index: {}]
  %s3 = inlined_call_operand.vmem [shape: f32[32,32], index: 3, kind: input, shape index: {}]
  %s4 = inlined_call_operand.vmem [shape: f32[1,32], index: 4, kind: input, shape index: {}]
  %s5 = inlined_call_operand.hbm [shape: f32[2,8,32], index: 5, kind: output, shape index: {}]
  %s6 = sld [smem:[#allocation0]]
  $region53: #{tpu_custom_call.1} parent=0
    _
  %s8 = ssub.s32 1, %s6
  %s9 = scalar_select 0, %s8, %s6
  $region1: #{tpu_custom_call.1} parent=0
    #allocation2 [shape = 'u8[8192]{0}', space=vmem, size = 0x2000, scoped, tag = 'output window, operand 0']
    #allocation3 [shape = 's32[2]{0}', space=sflag, size = 0x8, scoped, tag = 'scoped memory for tpu_custom_call.1']
    %10 = vsyncpa [#allocation3], 0
    %s11 = scalar_lea.sflag [#allocation3], 1
    %12 = vsyncpa %s11, 0
    loop: start=0, step=1, limit=4
    $region2: #{tpu_custom_call.1} parent=1 // loop_pre_header
      _
    $region3: #{tpu_custom_call.1} parent=1 // loop_header
      %s14 = sphi 0, %s18
      %p15 = scmp.ge.s32.totalorder %s14, 4
      %s24 = sphi 0, %s26
      %s27 = sphi 0, %s24
      %s28 = sphi 0, %s27
      %s44 = sphi 0, %s28
      %s50 = sphi 0, %s52
      %s53 = sphi 0, %s50
      %s54 = sphi 0, %s53
      %s70 = sphi 0, %s54
      %s74 = sphi 0, %s74
      %s76 = sphi 0, %s74
      %s77 = sphi 0, %s76
      %s91 = sphi 0, %s77
      %s95 = sphi 0, %s95
      %s97 = sphi 0, %s95
      %s98 = sphi 0, %s97
      %s112 = sphi 0, %s98
      %s116 = sphi 0, %s116
      %s118 = sphi 0, %s116
      %s119 = sphi 0, %s118
      %s133 = sphi 0, %s119
      %s139 = sphi 0, %s141
      %s142 = sphi 0, %s139
      %s143 = sphi 0, %s142
      %s159 = sphi 0, %s143
    $region4: #{tpu_custom_call.1} parent=1 // loop_header_branch
      %17 = sbr.rel (%p15) target = $region8
    $region5: #{tpu_custom_call.1} parent=1 // loop_body
      %s19 = ssub.s32 %s14, 1
      %s20 = ssub.s32 %s14, 2
      %s21 = sadd.s32 %s14, 1
      %s22 = ssub.s32 %s14, %s21
      %p23 = scmp.eq.s32.totalorder %s22, 0
      %s25 = sadd.s32 %s24, 1
      %s26 = scalar_select %p23, %s24, %s25
      %p29 = pneg %p23
      %p30 = scmp.eq.s32.totalorder %s14, 1
      %p31 = por %p29, %p30
      %p32 = scmp.ne.s32.totalorder %s24, %s27
      %p33 = scmp.eq.s32.totalorder %s14, 0
      %p34 = por %p32, %p33
      %p35 = scmp.ne.s32.totalorder %s24, %s27
      %p36 = scmp.eq.s32.totalorder %s19, 1
      %p37 = por %p35, %p36
      %p38 = scmp.ne.s32.totalorder %s27, %s28
      %p39 = scmp.eq.s32.totalorder %s19, 0
      %p40 = por %p38, %p39
      %p41 = scmp.ne.s32.totalorder %s27, %s28
      %p42 = scmp.eq.s32.totalorder %s20, 1
      %p43 = por %p41, %p42
      %p45 = scmp.ne.s32.totalorder %s28, %s44
      %p46 = scmp.eq.s32.totalorder %s20, 0
      %p47 = por %p45, %p46
      %s48 = ssub.s32 %s14, %s21
      %p49 = scmp.eq.s32.totalorder %s48, 0
      %s51 = sadd.s32 %s50, 1
      %s52 = scalar_select %p49, %s50, %s51
      %p55 = pneg %p49
      %p56 = scmp.eq.s32.totalorder %s14, 1
      %p57 = por %p55, %p56
      %p58 = scmp.ne.s32.totalorder %s50, %s53
      %p59 = scmp.eq.s32.totalorder %s14, 0
      %p60 = por %p58, %p59
      %p61 = scmp.ne.s32.totalorder %s50, %s53
      %p62 = scmp.eq.s32.totalorder %s19, 1
      %p63 = por %p61, %p62
      %p64 = scmp.ne.s32.totalorder %s53, %s54
      %p65 = scmp.eq.s32.totalorder %s19, 0
      %p66 = por %p64, %p65
      %p67 = scmp.ne.s32.totalorder %s53, %s54
      %p68 = scmp.eq.s32.totalorder %s20, 1
      %p69 = por %p67, %p68
      %p71 = scmp.ne.s32.totalorder %s54, %s70
      %p72 = scmp.eq.s32.totalorder %s20, 0
      %p73 = por %p71, %p72
      %s75 = sadd.s32 %s74, 1
      %p78 = scmp.eq.s32.totalorder %s14, 1
      %p79 = scmp.ne.s32.totalorder %s74, %s76
      %p80 = scmp.eq.s32.totalorder %s14, 0
      %p81 = por %p79, %p80
      %p82 = scmp.ne.s32.totalorder %s74, %s76
      %p83 = scmp.eq.s32.totalorder %s19, 1
      %p84 = por %p82, %p83
      %p85 = scmp.ne.s32.totalorder %s76, %s77
      %p86 = scmp.eq.s32.totalorder %s19, 0
      %p87 = por %p85, %p86
      %p88 = scmp.ne.s32.totalorder %s76, %s77
      %p89 = scmp.eq.s32.totalorder %s20, 1
      %p90 = por %p88, %p89
      %p92 = scmp.ne.s32.totalorder %s77, %s91
      %p93 = scmp.eq.s32.totalorder %s20, 0
      %p94 = por %p92, %p93
      %s96 = sadd.s32 %s95, 1
      %p99 = scmp.eq.s32.totalorder %s14, 1
      %p100 = scmp.ne.s32.totalorder %s95, %s97
      %p101 = scmp.eq.s32.totalorder %s14, 0
      %p102 = por %p100, %p101
      %p103 = scmp.ne.s32.totalorder %s95, %s97
      %p104 = scmp.eq.s32.totalorder %s19, 1
      %p105 = por %p103, %p104
      %p106 = scmp.ne.s32.totalorder %s97, %s98
      %p107 = scmp.eq.s32.totalorder %s19, 0
      %p108 = por %p106, %p107
      %p109 = scmp.ne.s32.totalorder %s97, %s98
      %p110 = scmp.eq.s32.totalorder %s20, 1
      %p111 = por %p109, %p110
      %p113 = scmp.ne.s32.totalorder %s98, %s112
      %p114 = scmp.eq.s32.totalorder %s20, 0
      %p115 = por %p113, %p114
      %s117 = sadd.s32 %s116, 1
      %p120 = scmp.eq.s32.totalorder %s14, 1
      %p121 = scmp.ne.s32.totalorder %s116, %s118
      %p122 = scmp.eq.s32.totalorder %s14, 0
      %p123 = por %p121, %p122
      %p124 = scmp.ne.s32.totalorder %s116, %s118
      %p125 = scmp.eq.s32.totalorder %s19, 1
      %p126 = por %p124, %p125
      %p127 = scmp.ne.s32.totalorder %s118, %s119
      %p128 = scmp.eq.s32.totalorder %s19, 0
      %p129 = por %p127, %p128
      %p130 = scmp.ne.s32.totalorder %s118, %s119
      %p131 = scmp.eq.s32.totalorder %s20, 1
      %p132 = por %p130, %p131
      %p134 = scmp.ne.s32.totalorder %s119, %s133
      %p135 = scmp.eq.s32.totalorder %s20, 0
      %p136 = por %p134, %p135
      %s137 = ssub.s32 %s14, %s21
      %p138 = scmp.eq.s32.totalorder %s137, 0
      %s140 = sadd.s32 %s139, 1
      %s141 = scalar_select %p138, %s139, %s140
      %p144 = pneg %p138
      %p145 = scmp.eq.s32.totalorder %s14, 1
      %p146 = por %p144, %p145
      %p147 = scmp.ne.s32.totalorder %s139, %s142
      %p148 = scmp.eq.s32.totalorder %s14, 0
      %p149 = por %p147, %p148
      %p150 = scmp.ne.s32.totalorder %s139, %s142
      %p151 = scmp.eq.s32.totalorder %s19, 1
      %p152 = por %p150, %p151
      %p153 = scmp.ne.s32.totalorder %s142, %s143
      %p154 = scmp.eq.s32.totalorder %s19, 0
      %p155 = por %p153, %p154
      %p156 = scmp.ne.s32.totalorder %s142, %s143
      %p157 = scmp.eq.s32.totalorder %s20, 1
      %p158 = por %p156, %p157
      %p160 = scmp.ne.s32.totalorder %s143, %s159
      %p161 = scmp.eq.s32.totalorder %s20, 0
      %p162 = por %p160, %p161
      %p163 = scmp.le.s32.totalorder 1, %s14
      %p164 = scmp.lt.s32.totalorder %s14, 3
      %p165 = pnand %p163, %p164
      %p166 = pneg %p165
      // Predicated region
      $region9: #{tpu_custom_call.1} parent=5 // pred_check
        _
      $region10: #{tpu_custom_call.1} parent=5 // pred_check_branch
        %168 = sbr.rel (%p165) target = $region12
      $region11: #{tpu_custom_call.1} parent=5 // pred_region
        %s169 = ssub.s32 %s14, 1
        // Predicated region
        $region13: #{tpu_custom_call.1} parent=11 // pred_check
          %p170 = pneg %p87
        $region14: #{tpu_custom_call.1} parent=11 // pred_check_branch
          %172 = sbr.rel (%p170) target = $region16
        $region15: #{tpu_custom_call.1} parent=11 // pred_region
          _
        $region16: #{tpu_custom_call.1} parent=11 // pred_fallthru
          _
        // Predicated region
        $region17: #{tpu_custom_call.1} parent=11 // pred_check
          %p173 = pneg %p108
        $region18: #{tpu_custom_call.1} parent=11 // pred_check_branch
          %175 = sbr.rel (%p173) target = $region20
        $region19: #{tpu_custom_call.1} parent=11 // pred_region
          _
        $region20: #{tpu_custom_call.1} parent=11 // pred_fallthru
          _
        // Predicated region
        $region21: #{tpu_custom_call.1} parent=11 // pred_check
          %p176 = pneg %p129
        $region22: #{tpu_custom_call.1} parent=11 // pred_check_branch
          %178 = sbr.rel (%p176) target = $region24
        $region23: #{tpu_custom_call.1} parent=11 // pred_region
          _
        $region24: #{tpu_custom_call.1} parent=11 // pred_fallthru
          _
      $region12: #{tpu_custom_call.1} parent=5 // pred_fallthru
        _
      %p179 = scmp.lt.s32.totalorder %s14, 2
      // Predicated region
      $region25: #{tpu_custom_call.1} parent=5 // pred_check
        %p180 = pneg %p179
      $region26: #{tpu_custom_call.1} parent=5 // pred_check_branch
        %182 = sbr.rel (%p180) target = $region28
      $region27: #{tpu_custom_call.1} parent=5 // pred_region
        // Predicated region
        $region29: #{tpu_custom_call.1} parent=27 // pred_check
          %p183 = pneg %p34
        $region30: #{tpu_custom_call.1} parent=27 // pred_check_branch
          %185 = sbr.rel (%p183) target = $region32
        $region31: #{tpu_custom_call.1} parent=27 // pred_region
          %p186 = scmp.lt.s32.totalorder %s14, 1
          %s187 = scalar_select %p186, %s14, 1
          %s188 = smul.addr %s187, 8
          %s189 = scalar_lea.vmem %s0, %s188
        $region32: #{tpu_custom_call.1} parent=27 // pred_fallthru
          _
        // Predicated region
        $region33: #{tpu_custom_call.1} parent=27 // pred_check
          %p190 = pneg %p60
        $region34: #{tpu_custom_call.1} parent=27 // pred_check_branch
          %192 = sbr.rel (%p190) target = $region36
        $region35: #{tpu_custom_call.1} parent=27 // pred_region
          %p193 = scmp.lt.s32.totalorder %s14, 1
          %s194 = scalar_select %p193, %s14, 1
          %s195 = smul.addr %s194, 4
          %s196 = smul.addr %s195, 8
          %s197 = scalar_lea.vmem %s1, %s196
        $region36: #{tpu_custom_call.1} parent=27 // pred_fallthru
          _
      $region28: #{tpu_custom_call.1} parent=5 // pred_fallthru
        _
      %p198 = scmp.le.s32.totalorder 1, %s14
      %p199 = scmp.lt.s32.totalorder %s14, 3
      %p200 = pnand %p198, %p199
      %p201 = pneg %p200
      // Predicated region
      $region37: #{tpu_custom_call.1} parent=5 // pred_check
        _
      $region38: #{tpu_custom_call.1} parent=5 // pred_check_branch
        %203 = sbr.rel (%p200) target = $region40
      $region39: #{tpu_custom_call.1} parent=5 // pred_region
        %s204 = ssub.s32 %s14, 1
        %p205 = scmp.lt.s32.totalorder %s19, 1
        %s206 = scalar_select %p205, %s19, 1
        %s207 = smul.addr %s206, 8
        %s208 = scalar_lea.vmem %s0, %s207
        %p209 = pneg %p40
        %p210 = pneg %p37
        %p211 = scmp.lt.s32.totalorder %s19, 1
        %s212 = scalar_select %p211, %s19, 1
        %s213 = smul.addr %s212, 4
        %s214 = smul.addr %s213, 8
        %s215 = scalar_lea.vmem %s1, %s214
        %p216 = pneg %p66
        %p217 = pneg %p63
        %p218 = pneg %p87
        %p219 = pneg %p84
        %p220 = pneg %p108
        %p221 = pneg %p105
        %p222 = pneg %p129
        %p223 = pneg %p126
        %p224 = pneg %p155
        %p225 = pneg %p152
        %s226 = sand.u32 %s142, 1
        %s227 = scalar_lea.sflag [#allocation3], %s226
        %s228 = sand.u32 %s142, 1
        %s229 = smul.addr %s228, 8
        %s230 = scalar_lea.vmem [#allocation2], %s229
        %p231 = scmp.lt.s32.totalorder %s19, 1
        %s232 = scalar_select %p231, %s19, 1
        %s233 = smul.addr %s232, 8
        %s234 = scalar_lea.vmem %s0, %s233
        %p235 = scmp.lt.s32.totalorder %s19, 1
        %s236 = scalar_select %p235, %s19, 1
        %s237 = smul.addr %s236, 4
        %s238 = smul.addr %s237, 8
        %s239 = scalar_lea.vmem %s1, %s238
        %v240 = vld [vmem:[%s234] sm:$0xff]
        %v241 = vld [vmem:[%s239] sm:$0xff]
        %v242 = vld [vmem:[%s239 + $0x8] sm:$0xff]
        %v243 = vld [vmem:[%s239 + $0x10] sm:$0xff]
        %v244 = vld [vmem:[%s239 + $0x18] sm:$0xff]
        %v245 = vld [vmem:[%s2] sm:$0xff]
        %v246 = vld [vmem:[%s2 + $0x8] sm:$0xff]
        %v247 = vld [vmem:[%s2 + $0x10] sm:$0xff]
        %v248 = vld [vmem:[%s2 + $0x18] sm:$0xff]
        %vm249 = vcmask 261120
        %v251 = vsel %vm249, %v240, 0
        %253 = vmatprep.subr.mxu0 0.0
        %254 = vmatpush1.msra.mxu0 %v245
        %255 = vmatprep.subr.mxu0 0.0
        %256 = vmatpush1.msra.mxu0 %v246
        %257 = vmatprep.subr.mxu0 0.0
        %258 = vmatpush1.msra.mxu0 %v247
        %259 = vmatprep.subr.mxu0 0.0
        %260 = vmatpush1.msra.mxu0 %v248
        %261 = vmatprep.subr.mxu0 0.0
        %262 = vmatpush1.msra.mxu0 0.0
        %263 = vmatprep.subr.mxu0 0.0
        %264 = vmatpush1.msra.mxu0 0.0
        %265 = vmatprep.subr.mxu0 0.0
        %266 = vmatpush1.msra.mxu0 0.0
        %267 = vmatprep.subr.mxu0 0.0
        %268 = vmatpush1.msra.mxu0 0.0
        %269 = vmatprep.subr.mxu0 0.0
        %270 = vmatpush1.msra.mxu0 0.0
        %271 = vmatprep.subr.mxu0 0.0
        %272 = vmatpush1.msra.mxu0 0.0
        %273 = vmatprep.subr.mxu0 0.0
        %274 = vmatpush1.msra.mxu0 0.0
        %275 = vmatprep.subr.mxu0 0.0
        %276 = vmatpush1.msra.mxu0 0.0
        %277 = vmatprep.subr.mxu0 0.0
        %278 = vmatpush1.msra.mxu0 0.0
        %279 = vmatprep.subr.mxu0 0.0
        %280 = vmatpush1.msra.mxu0 0.0
        %281 = vmatprep.subr.mxu0 0.0
        %282 = vmatpush1.msra.mxu0 0.0
        %283 = vmatprep.subr.mxu0 0.0
        %284 = vmatpush1.msra.mxu0 0.0
        %285 = vmatprep.subr.mxu0 0.0
        %286 = vmatpush1.msra.mxu0 0.0
        %287 = vmatprep.subr.mxu0 0.0
        %288 = vmatpush1.msra.mxu0 0.0
        %289 = vmatprep.subr.mxu0 0.0
        %290 = vmatpush1.msra.mxu0 0.0
        %291 = vmatprep.subr.mxu0 0.0
        %292 = vmatpush1.msra.mxu0 0.0
        %293 = vmatprep.subr.mxu0 0.0
        %294 = vmatpush1.msra.mxu0 0.0
        %295 = vmatprep.subr.mxu0 0.0
        %296 = vmatpush1.msra.mxu0 0.0
        %297 = vmatprep.subr.mxu0 0.0
        %298 = vmatpush1.msra.mxu0 0.0
        %299 = vmatprep.subr.mxu0 0.0
        %300 = vmatpush1.msra.mxu0 0.0
        %301 = vmatprep.subr.mxu0 0.0
        %302 = vmatpush1.msra.mxu0 0.0
        %303 = vmatprep.subr.mxu0 0.0
        %304 = vmatpush1.msra.mxu0 0.0
        %305 = vmatprep.subr.mxu0 0.0
        %306 = vmatpush1.msra.mxu0 0.0
        %307 = vmatprep.subr.mxu0 0.0
        %308 = vmatpush1.msra.mxu0 0.0
        %309 = vmatprep.subr.mxu0 0.0
        %310 = vmatpush1.msra.mxu0 0.0
        %311 = vmatprep.subr.mxu0 0.0
        %312 = vmatpush1.msra.mxu0 0.0
        %313 = vmatprep.subr.mxu0 0.0
        %314 = vmatpush1.msra.mxu0 0.0
        %315 = vmatprep.subr.mxu0 0.0
        %316 = vmatpush1.msra.mxu0 0.0
        %317 = vmatprep.mubr.f32.mxu0 0.0
        %318 = vmatmul.mubr.f32.gmra.mrb[0].mxu0 %v251
        %v319 = vpop.f32.mrb[0].mxu0
        %v320 = vadd.f32 0.0, %v319
        %v321 = vpop.f32.mrb[0].mxu0
        %322 = vdwg.mxu0
        %v323 = vld [vmem:[%s3] sm:$0xff]
        %v324 = vld [vmem:[%s3 + $0x8] sm:$0xff]
        %v325 = vld [vmem:[%s3 + $0x10] sm:$0xff]
        %v326 = vld [vmem:[%s3 + $0x18] sm:$0xff]
        %327 = vxpose.xlu0.b32.start [1/16] %v241, 128
        %328 = vxpose.xlu0.b32.cont [2/16] %v242, 128
        %329 = vxpose.xlu0.b32.cont [3/16] %v243, 128
        %330 = vxpose.xlu0.b32.cont [4/16] %v244, 128
        %331 = vxpose.xlu0.b32.cont [5/16] 0.0, 128
        %332 = vxpose.xlu0.b32.cont [6/16] 0.0, 128
        %333 = vxpose.xlu0.b32.cont [7/16] 0.0, 128
        %334 = vxpose.xlu0.b32.cont [8/16] 0.0, 128
        %335 = vxpose.xlu0.b32.cont [9/16] 0.0, 128
        %336 = vxpose.xlu0.b32.cont [10/16] 0.0, 128
        %337 = vxpose.xlu0.b32.cont [11/16] 0.0, 128
        %338 = vxpose.xlu0.b32.cont [12/16] 0.0, 128
        %339 = vxpose.xlu0.b32.cont [13/16] 0.0, 128
        %340 = vxpose.xlu0.b32.cont [14/16] 0.0, 128
        %341 = vxpose.xlu0.b32.cont [15/16] 0.0, 128
        %342 = vxpose.xlu0.b32.end [16/16] 0.0, 128
        %v343 = vpop.trf.xlu0
        %v344 = vpop.trf.xlu0
        %v345 = vpop.trf.xlu0
        %v346 = vpop.trf.xlu0
        %v347 = vpop.trf.xlu0
        %v348 = vpop.trf.xlu0
        %v349 = vpop.trf.xlu0
        %v350 = vpop.trf.xlu0
        %v351 = vpop.trf.xlu0
        %v352 = vpop.trf.xlu0
        %v353 = vpop.trf.xlu0
        %v354 = vpop.trf.xlu0
        %v355 = vpop.trf.xlu0
        %v356 = vpop.trf.xlu0
        %v357 = vpop.trf.xlu0
        %v358 = vpop.trf.xlu0
        %v360 = vsel %vm249, %v343, 0
        %362 = vmatprep.subr.mxu0 0.0
        %363 = vmatpush1.msra.mxu0 %v323
        %364 = vmatprep.subr.mxu0 0.0
        %365 = vmatpush1.msra.mxu0 %v324
        %366 = vmatprep.subr.mxu0 0.0
        %367 = vmatpush1.msra.mxu0 %v325
        %368 = vmatprep.subr.mxu0 0.0
        %369 = vmatpush1.msra.mxu0 %v326
        %370 = vmatprep.subr.mxu0 0.0
        %371 = vmatpush1.msra.mxu0 0.0
        %372 = vmatprep.subr.mxu0 0.0
        %373 = vmatpush1.msra.mxu0 0.0
        %374 = vmatprep.subr.mxu0 0.0
        %375 = vmatpush1.msra.mxu0 0.0
        %376 = vmatprep.subr.mxu0 0.0
        %377 = vmatpush1.msra.mxu0 0.0
        %378 = vmatprep.subr.mxu0 0.0
        %379 = vmatpush1.msra.mxu0 0.0
        %380 = vmatprep.subr.mxu0 0.0
        %381 = vmatpush1.msra.mxu0 0.0
        %382 = vmatprep.subr.mxu0 0.0
        %383 = vmatpush1.msra.mxu0 0.0
        %384 = vmatprep.subr.mxu0 0.0
        %385 = vmatpush1.msra.mxu0 0.0
        %386 = vmatprep.subr.mxu0 0.0
        %387 = vmatpush1.msra.mxu0 0.0
        %388 = vmatprep.subr.mxu0 0.0
        %389 = vmatpush1.msra.mxu0 0.0
        %390 = vmatprep.subr.mxu0 0.0
        %391 = vmatpush1.msra.mxu0 0.0
        %392 = vmatprep.subr.mxu0 0.0
        %393 = vmatpush1.msra.mxu0 0.0
        %394 = vmatprep.subr.mxu0 0.0
        %395 = vmatpush1.msra.mxu0 0.0
        %396 = vmatprep.subr.mxu0 0.0
        %397 = vmatpush1.msra.mxu0 0.0
        %398 = vmatprep.subr.mxu0 0.0
        %399 = vmatpush1.msra.mxu0 0.0
        %400 = vmatprep.subr.mxu0 0.0
        %401 = vmatpush1.msra.mxu0 0.0
        %402 = vmatprep.subr.mxu0 0.0
        %403 = vmatpush1.msra.mxu0 0.0
        %404 = vmatprep.subr.mxu0 0.0
        %405 = vmatpush1.msra.mxu0 0.0
        %406 = vmatprep.subr.mxu0 0.0
        %407 = vmatpush1.msra.mxu0 0.0
        %408 = vmatprep.subr.mxu0 0.0
        %409 = vmatpush1.msra.mxu0 0.0
        %410 = vmatprep.subr.mxu0 0.0
        %411 = vmatpush1.msra.mxu0 0.0
        %412 = vmatprep.subr.mxu0 0.0
        %413 = vmatpush1.msra.mxu0 0.0
        %414 = vmatprep.subr.mxu0 0.0
        %415 = vmatpush1.msra.mxu0 0.0
        %416 = vmatprep.subr.mxu0 0.0
        %417 = vmatpush1.msra.mxu0 0.0
        %418 = vmatprep.subr.mxu0 0.0
        %419 = vmatpush1.msra.mxu0 0.0
        %420 = vmatprep.subr.mxu0 0.0
        %421 = vmatpush1.msra.mxu0 0.0
        %422 = vmatprep.subr.mxu0 0.0
        %423 = vmatpush1.msra.mxu0 0.0
        %424 = vmatprep.subr.mxu0 0.0
        %425 = vmatpush1.msra.mxu0 0.0
        %426 = vmatprep.mubr.f32.mxu0 0.0
        %427 = vmatmul.mubr.f32.gmra.mrb[0].mxu0 %v360
        %v428 = vpop.f32.mrb[0].mxu0
        %v429 = vadd.f32 0.0, %v428
        %v430 = vpop.f32.mrb[0].mxu0
        %431 = vdwg.mxu0
        %v432 = vadd.f32 %v320, %v429
        %v433 = vld [vmem:[%s4] sm:$0x1]
        %v435 = vlaneseq
        %v436 = vshrl.u32 %v435, 7
        %v437 = vsub.s32 0, %v436
        %v438 = vrot.slane %v433, %v437
        %v440 = vadd.f32 %v432, %v438
        %v441 = vxor.u32 %v440, 2147483648
        %v442 = vmul.f32 %v441, 1.442695
        %v443 = vpow.pop %v442
        %v444 = vadd.f32 %v443, 1.0
        %v445 = vrcp.pop %v444
        %v446 = vmul.f32 1.0, %v445
        %v447 = vmul.f32 %v320, %v446
        %v448 = vsub.f32 1.0, %v446
        %v449 = vmul.f32 %v429, %v448
        %v450 = vadd.f32 %v447, %v449
        %451 = vst.msk [vmem:[%s230] sm:$0xff] %vm249, %v450
        %s452 = sand.u32 %s142, 1
        %s453 = scalar_lea.sflag [#allocation3], %s452
        %s454 = sand.u32 %s142, 1
        %s455 = smul.addr %s454, 8
        %s456 = scalar_lea.vmem [#allocation2], %s455
        // Predicated region
        $region41: #{tpu_custom_call.1} parent=39 // pred_check
          %p457 = pneg %p152
        $region42: #{tpu_custom_call.1} parent=39 // pred_check_branch
          %459 = sbr.rel (%p457) target = $region44
        $region43: #{tpu_custom_call.1} parent=39 // pred_region
          %s461 = ssub.s32 128, 128
          %462 = vsyncadd %s453, %s461
          %s463 = smul.addr %s19, 128
          %s464 = scalar_lea.hbm %s5, %s463
          %s466 = sshll.u32 %s456, 4
          %s467 = int_to_ptr.vmem [resolvable:$true] %s466
          %469 = dma.vmem_to_hbm [thread:$0]  %s467, 128, %s464, %s453
        $region44: #{tpu_custom_call.1} parent=39 // pred_fallthru
          _
      $region40: #{tpu_custom_call.1} parent=5 // pred_fallthru
        _
      %p470 = scmp.le.s32.totalorder 2, %s14
      // Predicated region
      $region45: #{tpu_custom_call.1} parent=5 // pred_check
        %p471 = pneg %p470
      $region46: #{tpu_custom_call.1} parent=5 // pred_check_branch
        %473 = sbr.rel (%p471) target = $region48
      $region47: #{tpu_custom_call.1} parent=5 // pred_region
        %s474 = ssub.s32 %s14, 2
        // Predicated region
        $region49: #{tpu_custom_call.1} parent=47 // pred_check
          %p475 = pneg %p158
        $region50: #{tpu_custom_call.1} parent=47 // pred_check_branch
          %477 = sbr.rel (%p475) target = $region52
        $region51: #{tpu_custom_call.1} parent=47 // pred_region
          %s478 = sand.u32 %s143, 1
          %s479 = scalar_lea.sflag [#allocation3], %s478
          %s480 = sand.u32 %s143, 1
          %s481 = smul.addr %s480, 8
          %s482 = scalar_lea.vmem [#allocation2], %s481
          %483 = dma.done %s479, 128
        $region52: #{tpu_custom_call.1} parent=47 // pred_fallthru
          _
      $region48: #{tpu_custom_call.1} parent=5 // pred_fallthru
        _
    $region6: #{tpu_custom_call.1} parent=1 // loop_footer
      %s18 = sadd.s32 1, %s14
    $region7: #{tpu_custom_call.1} parent=1 // loop_footer_branch
      %13 = sbr.rel target = $region3
    $region8: #{tpu_custom_call.1} parent=1 // loop_exit
      _
    %484 = vsyncpa [#allocation3], 1
    %s485 = scalar_lea.sflag [#allocation3], 1
    %486 = vsyncpa %s485, 1

</llo_original>
